<compile_context>
chip_gen: v7x
topology: tpu7x:2x2x1
jax: 0.10.0
libtpu: 0.0.40
codegen_flags: <defaults>
</compile_context>

<pallas_src>
import functools

import jax
import jax.numpy as jnp
from jax.experimental import pallas as pl
from jax.experimental.pallas import tpu as pltpu


def _round_up(x, m):
    return ((x + m - 1) // m) * m


def _tpu_generation():
    """Best-effort TPU generation tag from device_kind; None if unknown."""
    try:
        kind = jax.devices()[0].device_kind.lower()
    except Exception:
        return None
    if "v5 lite" in kind or "v5lite" in kind or "v5e" in kind:
        return "v5e"
    if "v5" in kind:
        return "v5p"
    if "v6" in kind:
        return "v6e"
    if "v7" in kind:
        return "v7"
    return None


# generation -> (working-set byte budget for block sizing, explicit scoped-VMEM limit).
# v5e/v5p/v6e have 128 MiB physical VMEM (scoped defaults 16/32 MiB -> raise them);
# v7x has 64 MiB per TensorCore. Unknown chips keep the compiler default limit.
_GEN_BUDGETS = {
    "v5e": (72 << 20, 96 << 20),
    "v5p": (72 << 20, 96 << 20),
    "v6e": (76 << 20, 96 << 20),
    "v7":  (34 << 20, 44 << 20),
}
_DEFAULT_BUDGET = (10 << 20, None)


def _plan_block(n, s, e, d, dp, in_itemsize, block_batch=None):
    """Pick (TB, output lane-pack factor k, vmem_limit_bytes) from a byte budget."""
    budget, vmem_limit = _GEN_BUDGETS.get(_tpu_generation(), _DEFAULT_BUDGET)

    # Lane-dense output packing: fold k batch rows into one 128-lane output row.
    k = 128 // e if (e < 128 and 128 % e == 0 and e >= 8) else 1
    quantum = 8 * k
    if _round_up(n, 8) < quantum:     # tiny batch: don't inflate TB just to pack stores
        k, quantum = 1, 8

    if block_batch is not None:
        return max(quantum, _round_up(block_batch, quantum)), k, vmem_limit

    f32 = 4
    per_row = (2 * s * e * in_itemsize   # double-buffered encoder block
               + 2 * s * dp * f32        # pre-tanh projection + energy (f32)
               + s * e * f32             # f32 product feeding the weighted sum
               + 8 * s * f32             # scores / exp / softmax temporaries
               + 4 * dp * f32)           # hidden projection rows
    resident = (e + d + 2) * dp * f32 + (2 << 20)    # resident weights + slack
    rows = max(0, budget - resident) // per_row
    tb = max(quantum, (rows // quantum) * quantum)
    tb = min(tb, _round_up(n, quantum))              # never larger than the data
    cap2 = ((n - 1) // quantum) * quantum            # keep >= 2 grid steps (v7x: 2 TCs)
    if cap2 >= quantum:
        tb = min(tb, cap2)
    return tb, k, vmem_limit


def _nre_attention_kernel(enc_ref, hid_ref, w_e_ref, w_h_ref, b_ref, v_ref, out_ref,
                          *, tb, s, e, dp, k_pack, mxu_dtype):
    enc = enc_ref[...]                                        # [TB, S, E], caller dtype
    # Free view when S % 8 == 0 (sublane tiling preserved).
    # TODO(synk): if S % 8 != 0 this reshape may materialize a VMEM copy; switch to a
    # dot_general contracting E directly on the 3-D tile if such shapes ever matter.
    enc2d = enc.reshape(tb * s, e)

    # Encoder projection: one big MXU GEMM per block (operand cast in-kernel only,
    # so the f32 encoder in HBM is read once with no wrapper-side dtype copy).
    e_e = jnp.dot(enc2d.astype(mxu_dtype), w_e_ref[...],
                  preferred_element_type=jnp.float32)         # [TB*S, DP]

    # Hidden projection folded into the kernel (resident W_h^T + bias): tiny matmul.
    hidp = jnp.dot(hid_ref[...], w_h_ref[...],
                   preferred_element_type=jnp.float32) + b_ref[...]   # [TB, DP]

    energy = jnp.tanh(e_e.reshape(tb, s, dp) + hidp.reshape(tb, 1, dp))  # [TB,S,DP] f32

    # scores = <energy, v> over D: VPU multiply + lane reduce (padded lanes are zero).
    scores = jnp.sum(energy * v_ref[...].reshape(1, 1, dp), axis=-1)     # [TB, S]

    # Softmax over S in f32; EUP approximate reciprocal for the denominator.
    scores = scores - jnp.max(scores, axis=-1, keepdims=True)
    p = jnp.exp(scores)
    a = p * pl.reciprocal(jnp.sum(p, axis=-1, keepdims=True), approx=True)   # [TB, S]

    # weighted[b,:] = sum_s a[b,s]*enc[b,s,:]: multiply in the encoder dtype (bf16 if
    # the producer handed us bf16), accumulate the S-reduction in f32.
    a_mul = a.astype(enc.dtype) if enc.dtype != jnp.float32 else a
    weighted = jnp.sum((a_mul[:, :, None] * enc).astype(jnp.float32), axis=1)  # [TB, E]

    if k_pack > 1:
        # Lane-dense store: k batch rows per 128-lane output row (unmasked vst).
        out_ref[...] = weighted.reshape(tb // k_pack, k_pack * e).astype(out_ref.dtype)
    else:
        out_ref[...] = weighted.astype(out_ref.dtype)


def nre_attention(encoder_outputs, hidden, attn_w, attn_b, v_w,
                  *, block_batch=None, use_bf16_mxu=False):
    """encoder_outputs: [N, S, E], hidden: [N, D].
    attn_w: [D, D+E] (PyTorch Linear weight; concat order = [hidden | encoder]),
    attn_b: [D], v_w: [1, D].  Returns [1, N, E].

    use_bf16_mxu casts the encoder GEMM operands to bf16 *inside the kernel*
    (valid on v5e/v6e/v7x: all MXUs accept bf16; elementwise math stays f32)."""
    n, s, e = encoder_outputs.shape
    d = hidden.shape[1]
    out_dtype = encoder_outputs.dtype
    mxu_dtype = jnp.bfloat16 if use_bf16_mxu else jnp.float32
    dp = _round_up(d, 128)        # lane-dense projection width (zero-padded weights)

    # Split the concat-Linear: first D input features act on hidden, last E on encoder.
    w_h = attn_w[:, :d].T.astype(jnp.float32)        # [D, D]
    w_e = attn_w[:, d:].T.astype(mxu_dtype)          # [E, D]  (tiny MXU operand)
    b = attn_b.reshape(1, d).astype(jnp.float32)     # [1, D]
    v = v_w.reshape(1, d).astype(jnp.float32)        # [1, D]
    if dp != d:   # zero-pad the D (lane) dim once; padded lanes contribute exactly 0
        w_h = jnp.pad(w_h, ((0, 0), (0, dp - d)))
        w_e = jnp.pad(w_e, ((0, 0), (0, dp - d)))
        b = jnp.pad(b, ((0, 0), (0, dp - d)))
        v = jnp.pad(v, ((0, 0), (0, dp - d)))
    hid = hidden.astype(jnp.float32)                 # [N, D] (no-op when already f32)

    tb, k_pack, vmem_limit = _plan_block(
        n, s, e, d, dp, encoder_outputs.dtype.itemsize, block_batch)
    n_blocks = pl.cdiv(n, tb)

    in_specs = [
        pl.BlockSpec((tb, s, e), lambda i: (i, 0, 0)),   # encoder block (partial tail OK)
        pl.BlockSpec((tb, d), lambda i: (i, 0)),         # hidden block
        pl.BlockSpec((e, dp), lambda i: (0, 0)),         # W_e^T (resident)
        pl.BlockSpec((d, dp), lambda i: (0, 0)),         # W_h^T (resident)
        pl.BlockSpec((1, dp), lambda i: (0, 0)),         # bias
        pl.BlockSpec((1, dp), lambda i: (0, 0)),         # v
    ]
    if k_pack > 1:
        out_shape = jax.ShapeDtypeStruct((n_blocks * tb // k_pack, k_pack * e), out_dtype)
        out_spec = pl.BlockSpec((tb // k_pack, k_pack * e), lambda i: (i, 0))
    else:
        out_shape = jax.ShapeDtypeStruct((n, e), out_dtype)
        out_spec = pl.BlockSpec((tb, e), lambda i: (i, 0))

    kernel = functools.partial(_nre_attention_kernel, tb=tb, s=s, e=e, dp=dp,
                               k_pack=k_pack, mxu_dtype=mxu_dtype)

    out = pl.pallas_call(
        kernel,
        out_shape=out_shape,
        grid_spec=pltpu.PrefetchScalarGridSpec(
            num_scalar_prefetch=0,
            grid=(n_blocks,),
            in_specs=in_specs,
            out_specs=out_spec),
        compiler_params=pltpu.CompilerParams(
            dimension_semantics=("parallel",),           # megacore / 2-TC sharding
            vmem_limit_bytes=vmem_limit),
    )(encoder_outputs, hid, w_e, w_h, b, v)

    if k_pack > 1:
        out = out.reshape(n_blocks * tb, e)[:n]          # free row-major un-pack + trim
    return out[None, :, :]                               # [1, N, E] == permute(1, 0, 2)


def _reference(encoder_outputs, hidden, attn_w, attn_b, v_w):
    # Pure-JAX mirror of the PyTorch forward, for correctness checking.
    n, s, e = encoder_outputs.shape
    d = hidden.shape[1]
    enc = encoder_outputs.astype(jnp.float32)
    hid = jnp.broadcast_to(hidden[:, None, :], (n, s, d)).astype(jnp.float32)
    cat = jnp.concatenate([hid, enc], axis=2)            # [N, S, D+E]
    energy = jnp.tanh(cat @ attn_w.T + attn_b)            # [N, S, D]
    attention = (energy @ v_w.T)[..., 0]                  # [N, S]
    a = jax.nn.softmax(attention, axis=1)                 # [N, S]
    weighted = jnp.einsum("ns,nse->ne", a, enc)           # [N, E]
    return weighted[None, :, :]                           # [1, N, E]


if __name__ == "__main__":
    key = jax.random.PRNGKey(0)

    def make_case(k, n, s, e, d, enc_dtype=jnp.float32):
        k1, k2, k3, k4, k5 = jax.random.split(k, 5)
        enc = jax.random.normal(k1, (n, s, e), jnp.float32).astype(enc_dtype)
        hid = jax.random.normal(k2, (n, d), jnp.float32)
        attn_w = jax.random.normal(k3, (d, e + d), jnp.float32) * 0.1
        attn_b = jax.random.normal(k4, (d,), jnp.float32) * 0.1
        v_w = jax.random.normal(k5, (1, d), jnp.float32) * 0.1
        return enc, hid, attn_w, attn_b, v_w

    def check(args, tol, **kw):
        enc, hid, attn_w, attn_b, v_w = args
        ref = _reference(enc, hid, attn_w, attn_b, v_w)
        out = jax.block_until_ready(
            nre_attention(enc, hid, attn_w, attn_b, v_w, **kw))
        assert out.shape == ref.shape, (out.shape, ref.shape)
        assert jnp.allclose(out.astype(jnp.float32), ref, atol=tol, rtol=tol), \
            "kernel mismatch vs reference"

    k1, k2, k3 = jax.random.split(key, 3)

    # Small shapes (module defaults): single partial block, unpacked output path.
    case_a = make_case(k1, n=2, s=8, e=32, d=32)
    check(case_a, tol=1e-2)                               # f32 MXU path
    check(case_a, tol=3e-2, use_bf16_mxu=True)            # bf16 MXU operands (any gen)

    # Multi-block grid (>= 2 steps) + lane-packed (unmasked) output store path.
    case_b = make_case(k2, n=48, s=16, e=32, d=32)
    check(case_b, tol=1e-2)

    # Producer-materialized bf16 encoder (no wrapper-side cast), bf16 weighted multiply.
    case_c = make_case(k3, n=48, s=16, e=32, d=32, enc_dtype=jnp.bfloat16)
    check(case_c, tol=3e-2, use_bf16_mxu=True)

    print("KERNEL_OK")
</pallas_src>

<mosaic_0001>
module attributes {stable_mosaic.version = 11 : i64} {
  func.func @_nre_attention_kernel(%arg0: i32, %arg1: memref<8x8x32xf32, #tpu.memory_space<vmem>>, %arg2: memref<8x32xf32, #tpu.memory_space<vmem>>, %arg3: memref<32x128xf32, #tpu.memory_space<vmem>>, %arg4: memref<32x128xf32, #tpu.memory_space<vmem>>, %arg5: memref<1x128xf32, #tpu.memory_space<vmem>>, %arg6: memref<1x128xf32, #tpu.memory_space<vmem>>, %arg7: memref<8x32xf32, #tpu.memory_space<vmem>>) attributes {dimension_semantics = [#tpu.dimension_semantics<parallel>], iteration_bounds = array<i64: 1>, scalar_prefetch = 0 : i64, scratch_operands = 0 : i64, tpu.core_type = #tpu.core_type<tc>, window_params = [{transform_indices = @transform_0, window_bounds = array<i64: 8, 8, 32>}, {transform_indices = @transform_1, window_bounds = array<i64: 8, 32>}, {pipeline_mode = #tpu.pipeline_mode<synchronous>, transform_indices = @transform_2, window_bounds = array<i64: 32, 128>}, {pipeline_mode = #tpu.pipeline_mode<synchronous>, transform_indices = @transform_3, window_bounds = array<i64: 32, 128>}, {pipeline_mode = #tpu.pipeline_mode<synchronous>, transform_indices = @transform_4, window_bounds = array<i64: 1, 128>}, {pipeline_mode = #tpu.pipeline_mode<synchronous>, transform_indices = @transform_5, window_bounds = array<i64: 1, 128>}, {transform_indices = @transform_6, window_bounds = array<i64: 8, 32>}]} {
    %c0 = arith.constant 0 : index
    %c0_0 = arith.constant 0 : index
    %c0_1 = arith.constant 0 : index
    %0 = vector.load %arg1[%c0, %c0_0, %c0_1] : memref<8x8x32xf32, #tpu.memory_space<vmem>>, vector<8x8x32xf32>
    %1 = vector.shape_cast %0 : vector<8x8x32xf32> to vector<64x32xf32>
    %c0_2 = arith.constant 0 : index
    %c0_3 = arith.constant 0 : index
    %2 = vector.load %arg3[%c0_2, %c0_3] : memref<32x128xf32, #tpu.memory_space<vmem>>, vector<32x128xf32>
    %cst = arith.constant dense<0.000000e+00> : vector<64x128xf32>
    %3 = tpu.matmul %1, %2, %cst {dimension_numbers = #tpu.dot_dimension_numbers<[1], [0], [0], [1], [0, 0, 1, 1], [], []>} : vector<64x32xf32>, vector<32x128xf32>, vector<64x128xf32> -> vector<64x128xf32>
    %c0_4 = arith.constant 0 : index
    %c0_5 = arith.constant 0 : index
    %4 = vector.load %arg2[%c0_4, %c0_5] : memref<8x32xf32, #tpu.memory_space<vmem>>, vector<8x32xf32>
    %c0_6 = arith.constant 0 : index
    %c0_7 = arith.constant 0 : index
    %5 = vector.load %arg4[%c0_6, %c0_7] : memref<32x128xf32, #tpu.memory_space<vmem>>, vector<32x128xf32>
    %cst_8 = arith.constant dense<0.000000e+00> : vector<8x128xf32>
    %6 = tpu.matmul %4, %5, %cst_8 {dimension_numbers = #tpu.dot_dimension_numbers<[1], [0], [0], [1], [0, 0, 1, 1], [], []>} : vector<8x32xf32>, vector<32x128xf32>, vector<8x128xf32> -> vector<8x128xf32>
    %c0_9 = arith.constant 0 : index
    %c0_10 = arith.constant 0 : index
    %7 = vector.load %arg5[%c0_9, %c0_10] : memref<1x128xf32, #tpu.memory_space<vmem>>, vector<1x128xf32>
    %8 = vector.broadcast %7 : vector<1x128xf32> to vector<8x128xf32>
    %9 = arith.addf %6, %8 : vector<8x128xf32>
    %10 = vector.shape_cast %3 : vector<64x128xf32> to vector<8x8x128xf32>
    %11 = vector.shape_cast %9 : vector<8x128xf32> to vector<8x1x128xf32>
    %12 = vector.broadcast %11 : vector<8x1x128xf32> to vector<8x8x128xf32>
    %13 = arith.addf %10, %12 : vector<8x8x128xf32>
    %14 = math.tanh %13 : vector<8x8x128xf32>
    %c0_11 = arith.constant 0 : index
    %c0_12 = arith.constant 0 : index
    %15 = vector.load %arg6[%c0_11, %c0_12] : memref<1x128xf32, #tpu.memory_space<vmem>>, vector<1x128xf32>
    %16 = vector.shape_cast %15 : vector<1x128xf32> to vector<1x1x128xf32>
    %17 = vector.broadcast %16 : vector<1x1x128xf32> to vector<8x8x128xf32>
    %18 = arith.mulf %14, %17 : vector<8x8x128xf32>
    %cst_13 = arith.constant dense<0.000000e+00> : vector<8x8xf32>
    %19 = vector.multi_reduction <add>, %18, %cst_13 [2] : vector<8x8x128xf32> to vector<8x8xf32>
    %cst_14 = arith.constant dense<0xFF800000> : vector<8xf32>
    %20 = vector.multi_reduction <maximumf>, %19, %cst_14 [1] : vector<8x8xf32> to vector<8xf32>
    %21 = vector.shape_cast %20 : vector<8xf32> to vector<8x1xf32>
    %22 = vector.broadcast %21 : vector<8x1xf32> to vector<8x8xf32>
    %23 = arith.subf %19, %22 : vector<8x8xf32>
    %24 = math.exp %23 : vector<8x8xf32>
    %cst_15 = arith.constant dense<0.000000e+00> : vector<8xf32>
    %25 = vector.multi_reduction <add>, %24, %cst_15 [1] : vector<8x8xf32> to vector<8xf32>
    %26 = vector.shape_cast %25 : vector<8xf32> to vector<8x1xf32>
    %27 = tpu.reciprocal %26 {approx = true} : vector<8x1xf32> -> vector<8x1xf32>
    %28 = vector.broadcast %27 : vector<8x1xf32> to vector<8x8xf32>
    %29 = arith.mulf %24, %28 : vector<8x8xf32>
    %30 = vector.shape_cast %29 : vector<8x8xf32> to vector<8x8x1xf32>
    %31 = vector.broadcast %30 : vector<8x8x1xf32> to vector<8x8x32xf32>
    %32 = arith.mulf %31, %0 : vector<8x8x32xf32>
    %cst_16 = arith.constant dense<0.000000e+00> : vector<8x32xf32>
    %33 = vector.multi_reduction <add>, %32, %cst_16 [1] : vector<8x8x32xf32> to vector<8x32xf32>
    %c0_17 = arith.constant 0 : index
    %c0_18 = arith.constant 0 : index
    %34 = vector.load %arg7[%c0_17, %c0_18] : memref<8x32xf32, #tpu.memory_space<vmem>>, vector<8x32xf32>
    tpu.vector_store %arg7[%c0_17, %c0_18], %33 {strides = array<i32>} : memref<8x32xf32, #tpu.memory_space<vmem>>, vector<8x32xf32>,
    return
  }
  func.func @transform_0(%arg0: i32) -> (i32, i32, i32) {
    %c0_i32 = arith.constant 0 : i32
    %c0_i32_0 = arith.constant 0 : i32
    %c0_i32_1 = arith.constant 0 : i32
    return %arg0, %c0_i32, %c0_i32_0 : i32, i32, i32
  }
  func.func @transform_1(%arg0: i32) -> (i32, i32) {
    %c0_i32 = arith.constant 0 : i32
    %c0_i32_0 = arith.constant 0 : i32
    return %arg0, %c0_i32 : i32, i32
  }
  func.func @transform_2(%arg0: i32) -> (i32, i32) {
    %c0_i32 = arith.constant 0 : i32
    %c0_i32_0 = arith.constant 0 : i32
    %c0_i32_1 = arith.constant 0 : i32
    return %c0_i32, %c0_i32_0 : i32, i32
  }
  func.func @transform_3(%arg0: i32) -> (i32, i32) {
    %c0_i32 = arith.constant 0 : i32
    %c0_i32_0 = arith.constant 0 : i32
    %c0_i32_1 = arith.constant 0 : i32
    return %c0_i32, %c0_i32_0 : i32, i32
  }
  func.func @transform_4(%arg0: i32) -> (i32, i32) {
    %c0_i32 = arith.constant 0 : i32
    %c0_i32_0 = arith.constant 0 : i32
    %c0_i32_1 = arith.constant 0 : i32
    return %c0_i32, %c0_i32_0 : i32, i32
  }
  func.func @transform_5(%arg0: i32) -> (i32, i32) {
    %c0_i32 = arith.constant 0 : i32
    %c0_i32_0 = arith.constant 0 : i32
    %c0_i32_1 = arith.constant 0 : i32
    return %c0_i32, %c0_i32_0 : i32, i32
  }
  func.func @transform_6(%arg0: i32) -> (i32, i32) {
    %c0_i32 = arith.constant 0 : i32
    %c0_i32_0 = arith.constant 0 : i32
    return %arg0, %c0_i32 : i32, i32
  }
}

</mosaic_0001>

<llo_original>
// kernel: tpu_custom_call.1
$region0: #{tpu_custom_call.1}
  #allocation0 [shape = 'u32[]', space=smem, size = 0x4, offset = 0x4, fixed_abs, tag = 'smem constant byte address 0x4 - core index']
  #allocation1 [shape = 'u32[144,128]{1,0:T(1,128)}', space=vmem, size = 0x12000, scoped, tag = 'internal scratch']
  %s0 = inlined_call_operand.hbm [shape: f32[2,8,32], index: 0, kind: input, shape index: {}]
  %s1 = inlined_call_operand.vmem [shape: f32[2,32], index: 1, kind: input, shape index: {}]
  %s2 = inlined_call_operand.hbm [shape: f32[32,128], index: 2, kind: input, shape index: {}]
  %s3 = inlined_call_operand.hbm [shape: f32[32,128], index: 3, kind: input, shape index: {}]
  %s4 = inlined_call_operand.vmem [shape: f32[1,128], index: 4, kind: input, shape index: {}]
  %s5 = inlined_call_operand.vmem [shape: f32[1,128], index: 5, kind: input, shape index: {}]
  %s6 = inlined_call_operand.hbm [shape: f32[2,32], index: 6, kind: output, shape index: {}]
  %s7 = sld [smem:[#allocation0]]
  $region46: #{tpu_custom_call.1} parent=0
    _
  %s9 = ssub.s32 1, %s7
  %s10 = scalar_select 0, %s9, %s7
  $region1: #{tpu_custom_call.1} parent=0
    #allocation2 [shape = 'u8[32768]{0}', space=vmem, size = 0x8000, scoped, tag = 'input window, operand 0, single buffered']
    #allocation3 [shape = 's32[1]{0}', space=sflag, size = 0x4, scoped, tag = 'scoped memory for tpu_custom_call.1']
    #allocation4 [shape = 's32[1]{0}', space=sflag, size = 0x4, scoped, tag = 'scoped memory for tpu_custom_call.1']
    #allocation5 [shape = 'u8[16384]{0}', space=vmem, size = 0x4000, scoped, tag = 'input window, operand 2, single buffered']
    #allocation6 [shape = 's32[1]{0}', space=sflag, size = 0x4, scoped, tag = 'scoped memory for tpu_custom_call.1']
    #allocation7 [shape = 'u8[16384]{0}', space=vmem, size = 0x4000, scoped, tag = 'input window, operand 3, single buffered']
    #allocation8 [shape = 'u8[4096]{0}', space=vmem, size = 0x1000, scoped, tag = 'output window, operand 0, single buffered']
    %11 = vsyncpa [#allocation3], 0
    %12 = vsyncpa [#allocation6], 0
    %13 = vsyncpa [#allocation4], 0
    // Predicated region
    $region2: #{tpu_custom_call.1} parent=1 // pred_check
      _
    $region3: #{tpu_custom_call.1} parent=1 // pred_check_branch
      %15 = sbr.rel (0) target = $region5
    $region4: #{tpu_custom_call.1} parent=1 // pred_region
      %s17 = ssub.s32 1024, 256
      %18 = vsyncadd [#allocation3], %s17
      %s19 = sshll.u32 [#allocation2], 4
      %s20 = int_to_ptr.vmem [resolvable:$true] %s19
      %25 = dma.hbm_to_vmem [thread:$0]  %s0, 256, %s20, [#allocation3], 128, 128, 8
    $region5: #{tpu_custom_call.1} parent=1 // pred_fallthru
      _
    // Predicated region
    $region6: #{tpu_custom_call.1} parent=1 // pred_check
      _
    $region7: #{tpu_custom_call.1} parent=1 // pred_check_branch
      %27 = sbr.rel (0) target = $region9
    $region8: #{tpu_custom_call.1} parent=1 // pred_region
      _
    $region9: #{tpu_custom_call.1} parent=1 // pred_fallthru
      _
    // Predicated region
    $region10: #{tpu_custom_call.1} parent=1 // pred_check
      _
    $region11: #{tpu_custom_call.1} parent=1 // pred_check_branch
      %29 = sbr.rel (0) target = $region13
    $region12: #{tpu_custom_call.1} parent=1 // pred_region
      %s31 = ssub.s32 512, 512
      %32 = vsyncadd [#allocation6], %s31
      %s33 = sshll.u32 [#allocation5], 4
      %s34 = int_to_ptr.vmem [resolvable:$true] %s33
      %39 = dma.hbm_to_vmem [thread:$0]  %s2, 512, %s34, [#allocation6], 128, 128, 8
    $region13: #{tpu_custom_call.1} parent=1 // pred_fallthru
      _
    // Predicated region
    $region14: #{tpu_custom_call.1} parent=1 // pred_check
      _
    $region15: #{tpu_custom_call.1} parent=1 // pred_check_branch
      %41 = sbr.rel (0) target = $region17
    $region16: #{tpu_custom_call.1} parent=1 // pred_region
      %s43 = ssub.s32 512, 512
      %44 = vsyncadd [#allocation6], %s43
      %s45 = sshll.u32 [#allocation7], 4
      %s46 = int_to_ptr.vmem [resolvable:$true] %s45
      %51 = dma.hbm_to_vmem [thread:$0]  %s3, 512, %s46, [#allocation6], 128, 128, 8
    $region17: #{tpu_custom_call.1} parent=1 // pred_fallthru
      _
    // Predicated region
    $region18: #{tpu_custom_call.1} parent=1 // pred_check
      _
    $region19: #{tpu_custom_call.1} parent=1 // pred_check_branch
      %53 = sbr.rel (0) target = $region21
    $region20: #{tpu_custom_call.1} parent=1 // pred_region
      _
    $region21: #{tpu_custom_call.1} parent=1 // pred_fallthru
      _
    // Predicated region
    $region22: #{tpu_custom_call.1} parent=1 // pred_check
      _
    $region23: #{tpu_custom_call.1} parent=1 // pred_check_branch
      %55 = sbr.rel (0) target = $region25
    $region24: #{tpu_custom_call.1} parent=1 // pred_region
      _
    $region25: #{tpu_custom_call.1} parent=1 // pred_fallthru
      _
    // Predicated region
    $region26: #{tpu_custom_call.1} parent=1 // pred_check
      _
    $region27: #{tpu_custom_call.1} parent=1 // pred_check_branch
      %57 = sbr.rel (0) target = $region29
    $region28: #{tpu_custom_call.1} parent=1 // pred_region
      %58 = dma.done [#allocation3], 1024
    $region29: #{tpu_custom_call.1} parent=1 // pred_fallthru
      _
    // Predicated region
    $region30: #{tpu_custom_call.1} parent=1 // pred_check
      _
    $region31: #{tpu_custom_call.1} parent=1 // pred_check_branch
      %60 = sbr.rel (0) target = $region33
    $region32: #{tpu_custom_call.1} parent=1 // pred_region
      %61 = dma.done [#allocation6], 512
    $region33: #{tpu_custom_call.1} parent=1 // pred_fallthru
      _
    // Predicated region
    $region34: #{tpu_custom_call.1} parent=1 // pred_check
      _
    $region35: #{tpu_custom_call.1} parent=1 // pred_check_branch
      %63 = sbr.rel (0) target = $region37
    $region36: #{tpu_custom_call.1} parent=1 // pred_region
      %64 = dma.done [#allocation6], 512
    $region37: #{tpu_custom_call.1} parent=1 // pred_fallthru
      _
    %v65 = vld [vmem:[#allocation2] sm:$0xff]
    %v66 = vld [vmem:[#allocation2 + $0x8] sm:$0xff]
    %v67 = vld [vmem:[#allocation2 + $0x10] sm:$0xff]
    %v68 = vld [vmem:[#allocation2 + $0x18] sm:$0xff]
    %v69 = vld [vmem:[#allocation2 + $0x20] sm:$0xff]
    %v70 = vld [vmem:[#allocation2 + $0x28] sm:$0xff]
    %v71 = vld [vmem:[#allocation2 + $0x30] sm:$0xff]
    %v72 = vld [vmem:[#allocation2 + $0x38] sm:$0xff]
    %v73 = vld [vmem:[#allocation5] sm:$0xff]
    %v74 = vld [vmem:[#allocation5 + $0x8] sm:$0xff]
    %v75 = vld [vmem:[#allocation5 + $0x10] sm:$0xff]
    %v76 = vld [vmem:[#allocation5 + $0x18] sm:$0xff]
    %vm77 = vcmask 261120
    %v79 = vsel %vm77, %v65, 0
    %v82 = vsel %vm77, %v66, 0
    %v85 = vsel %vm77, %v67, 0
    %v88 = vsel %vm77, %v68, 0
    %v91 = vsel %vm77, %v69, 0
    %v94 = vsel %vm77, %v70, 0
    %v97 = vsel %vm77, %v71, 0
    %v100 = vsel %vm77, %v72, 0
    %102 = vmatprep.subr.mxu0 0.0
    %103 = vmatpush1.msra.mxu0 %v73
    %104 = vmatprep.subr.mxu0 0.0
    %105 = vmatpush1.msra.mxu0 %v74
    %106 = vmatprep.subr.mxu0 0.0
    %107 = vmatpush1.msra.mxu0 %v75
    %108 = vmatprep.subr.mxu0 0.0
    %109 = vmatpush1.msra.mxu0 %v76
    %110 = vmatprep.subr.mxu0 0.0
    %111 = vmatpush1.msra.mxu0 0.0
    %112 = vmatprep.subr.mxu0 0.0
    %113 = vmatpush1.msra.mxu0 0.0
    %114 = vmatprep.subr.mxu0 0.0
    %115 = vmatpush1.msra.mxu0 0.0
    %116 = vmatprep.subr.mxu0 0.0
    %117 = vmatpush1.msra.mxu0 0.0
    %118 = vmatprep.subr.mxu0 0.0
    %119 = vmatpush1.msra.mxu0 0.0
    %120 = vmatprep.subr.mxu0 0.0
    %121 = vmatpush1.msra.mxu0 0.0
    %122 = vmatprep.subr.mxu0 0.0
    %123 = vmatpush1.msra.mxu0 0.0
    %124 = vmatprep.subr.mxu0 0.0
    %125 = vmatpush1.msra.mxu0 0.0
    %126 = vmatprep.subr.mxu0 0.0
    %127 = vmatpush1.msra.mxu0 0.0
    %128 = vmatprep.subr.mxu0 0.0
    %129 = vmatpush1.msra.mxu0 0.0
    %130 = vmatprep.subr.mxu0 0.0
    %131 = vmatpush1.msra.mxu0 0.0
    %132 = vmatprep.subr.mxu0 0.0
    %133 = vmatpush1.msra.mxu0 0.0
    %134 = vmatprep.subr.mxu0 0.0
    %135 = vmatpush1.msra.mxu0 0.0
    %136 = vmatprep.subr.mxu0 0.0
    %137 = vmatpush1.msra.mxu0 0.0
    %138 = vmatprep.subr.mxu0 0.0
    %139 = vmatpush1.msra.mxu0 0.0
    %140 = vmatprep.subr.mxu0 0.0
    %141 = vmatpush1.msra.mxu0 0.0
    %142 = vmatprep.subr.mxu0 0.0
    %143 = vmatpush1.msra.mxu0 0.0
    %144 = vmatprep.subr.mxu0 0.0
    %145 = vmatpush1.msra.mxu0 0.0
    %146 = vmatprep.subr.mxu0 0.0
    %147 = vmatpush1.msra.mxu0 0.0
    %148 = vmatprep.subr.mxu0 0.0
    %149 = vmatpush1.msra.mxu0 0.0
    %150 = vmatprep.subr.mxu0 0.0
    %151 = vmatpush1.msra.mxu0 0.0
    %152 = vmatprep.subr.mxu0 0.0
    %153 = vmatpush1.msra.mxu0 0.0
    %154 = vmatprep.subr.mxu0 0.0
    %155 = vmatpush1.msra.mxu0 0.0
    %156 = vmatprep.subr.mxu0 0.0
    %157 = vmatpush1.msra.mxu0 0.0
    %158 = vmatprep.subr.mxu0 0.0
    %159 = vmatpush1.msra.mxu0 0.0
    %160 = vmatprep.subr.mxu0 0.0
    %161 = vmatpush1.msra.mxu0 0.0
    %162 = vmatprep.subr.mxu0 0.0
    %163 = vmatpush1.msra.mxu0 0.0
    %164 = vmatprep.subr.mxu0 0.0
    %165 = vmatpush1.msra.mxu0 0.0
    %166 = vmatprep.mubr.f32.mxu0 0.0
    %167 = vmatmul.mubr.f32.gmra.mrb[0].mxu0 %v79
    %v168 = vpop.f32.mrb[0].mxu0
    %v169 = vadd.f32 0.0, %v168
    %v170 = vpop.f32.mrb[0].mxu0
    %171 = vmatprep.mubr.f32.mxu0 0.0
    %172 = vmatmul.mubr.f32.gmra.mrb[0].mxu0 %v82
    %v173 = vpop.f32.mrb[0].mxu0
    %v174 = vadd.f32 0.0, %v173
    %v175 = vpop.f32.mrb[0].mxu0
    %176 = vmatprep.mubr.f32.mxu0 0.0
    %177 = vmatmul.mubr.f32.gmra.mrb[0].mxu0 %v85
    %v178 = vpop.f32.mrb[0].mxu0
    %v179 = vadd.f32 0.0, %v178
    %v180 = vpop.f32.mrb[0].mxu0
    %181 = vmatprep.mubr.f32.mxu0 0.0
    %182 = vmatmul.mubr.f32.gmra.mrb[0].mxu0 %v88
    %v183 = vpop.f32.mrb[0].mxu0
    %v184 = vadd.f32 0.0, %v183
    %v185 = vpop.f32.mrb[0].mxu0
    %186 = vmatprep.mubr.f32.mxu0 0.0
    %187 = vmatmul.mubr.f32.gmra.mrb[0].mxu0 %v91
    %v188 = vpop.f32.mrb[0].mxu0
    %v189 = vadd.f32 0.0, %v188
    %v190 = vpop.f32.mrb[0].mxu0
    %191 = vmatprep.mubr.f32.mxu0 0.0
    %192 = vmatmul.mubr.f32.gmra.mrb[0].mxu0 %v94
    %v193 = vpop.f32.mrb[0].mxu0
    %v194 = vadd.f32 0.0, %v193
    %v195 = vpop.f32.mrb[0].mxu0
    %196 = vmatprep.mubr.f32.mxu0 0.0
    %197 = vmatmul.mubr.f32.gmra.mrb[0].mxu0 %v97
    %v198 = vpop.f32.mrb[0].mxu0
    %v199 = vadd.f32 0.0, %v198
    %v200 = vpop.f32.mrb[0].mxu0
    %201 = vmatprep.mubr.f32.mxu0 0.0
    %202 = vmatmul.mubr.f32.gmra.mrb[0].mxu0 %v100
    %v203 = vpop.f32.mrb[0].mxu0
    %v204 = vadd.f32 0.0, %v203
    %v205 = vpop.f32.mrb[0].mxu0
    %206 = vdwg.mxu0
    %v207 = vld [vmem:[%s1] sm:$0xff]
    %v208 = vld [vmem:[#allocation7] sm:$0xff]
    %v209 = vld [vmem:[#allocation7 + $0x8] sm:$0xff]
    %v210 = vld [vmem:[#allocation7 + $0x10] sm:$0xff]
    %v211 = vld [vmem:[#allocation7 + $0x18] sm:$0xff]
    %v212 = vld [vmem:[%s4] sm:$0x1]
    %v214 = vlaneseq
    %v215 = vshrl.u32 %v214, 7
    %v216 = vsub.s32 0, %v215
    %v217 = vrot.slane %v212, %v216
    %v220 = vsel %vm77, %v207, 0
    %222 = vmatprep.subr.mxu0 0.0
    %223 = vmatpush1.msra.mxu0 %v208
    %224 = vmatprep.subr.mxu0 0.0
    %225 = vmatpush1.msra.mxu0 %v209
    %226 = vmatprep.subr.mxu0 0.0
    %227 = vmatpush1.msra.mxu0 %v210
    %228 = vmatprep.subr.mxu0 0.0
    %229 = vmatpush1.msra.mxu0 %v211
    %230 = vmatprep.subr.mxu0 0.0
    %231 = vmatpush1.msra.mxu0 0.0
    %232 = vmatprep.subr.mxu0 0.0
    %233 = vmatpush1.msra.mxu0 0.0
    %234 = vmatprep.subr.mxu0 0.0
    %235 = vmatpush1.msra.mxu0 0.0
    %236 = vmatprep.subr.mxu0 0.0
    %237 = vmatpush1.msra.mxu0 0.0
    %238 = vmatprep.subr.mxu0 0.0
    %239 = vmatpush1.msra.mxu0 0.0
    %240 = vmatprep.subr.mxu0 0.0
    %241 = vmatpush1.msra.mxu0 0.0
    %242 = vmatprep.subr.mxu0 0.0
    %243 = vmatpush1.msra.mxu0 0.0
    %244 = vmatprep.subr.mxu0 0.0
    %245 = vmatpush1.msra.mxu0 0.0
    %246 = vmatprep.subr.mxu0 0.0
    %247 = vmatpush1.msra.mxu0 0.0
    %248 = vmatprep.subr.mxu0 0.0
    %249 = vmatpush1.msra.mxu0 0.0
    %250 = vmatprep.subr.mxu0 0.0
    %251 = vmatpush1.msra.mxu0 0.0
    %252 = vmatprep.subr.mxu0 0.0
    %253 = vmatpush1.msra.mxu0 0.0
    %254 = vmatprep.subr.mxu0 0.0
    %255 = vmatpush1.msra.mxu0 0.0
    %256 = vmatprep.subr.mxu0 0.0
    %257 = vmatpush1.msra.mxu0 0.0
    %258 = vmatprep.subr.mxu0 0.0
    %259 = vmatpush1.msra.mxu0 0.0
    %260 = vmatprep.subr.mxu0 0.0
    %261 = vmatpush1.msra.mxu0 0.0
    %262 = vmatprep.subr.mxu0 0.0
    %263 = vmatpush1.msra.mxu0 0.0
    %264 = vmatprep.subr.mxu0 0.0
    %265 = vmatpush1.msra.mxu0 0.0
    %266 = vmatprep.subr.mxu0 0.0
    %267 = vmatpush1.msra.mxu0 0.0
    %268 = vmatprep.subr.mxu0 0.0
    %269 = vmatpush1.msra.mxu0 0.0
    %270 = vmatprep.subr.mxu0 0.0
    %271 = vmatpush1.msra.mxu0 0.0
    %272 = vmatprep.subr.mxu0 0.0
    %273 = vmatpush1.msra.mxu0 0.0
    %274 = vmatprep.subr.mxu0 0.0
    %275 = vmatpush1.msra.mxu0 0.0
    %276 = vmatprep.subr.mxu0 0.0
    %277 = vmatpush1.msra.mxu0 0.0
    %278 = vmatprep.subr.mxu0 0.0
    %279 = vmatpush1.msra.mxu0 0.0
    %280 = vmatprep.subr.mxu0 0.0
    %281 = vmatpush1.msra.mxu0 0.0
    %282 = vmatprep.subr.mxu0 0.0
    %283 = vmatpush1.msra.mxu0 0.0
    %284 = vmatprep.subr.mxu0 0.0
    %285 = vmatpush1.msra.mxu0 0.0
    %286 = vmatprep.mubr.f32.mxu0 0.0
    %287 = vmatmul.mubr.f32.gmra.mrb[0].mxu0 %v220
    %v288 = vpop.f32.mrb[0].mxu0
    %v289 = vadd.f32 %v217, %v288
    %v290 = vpop.f32.mrb[0].mxu0
    %291 = vdwg.mxu0
    %v293 = vcombine.high %v289, %v289
    %v295 = vunpack.c.l.s4 1966171168
    %v296 = vunpack.c.0.s8 %v295
    %v297 = vlaneseq
    %v298 = vshrl.u32 %v297, 7
    %v299 = vsub.s32 %v296, %v298
    %v300 = vrot.slane %v289, %v299
    %v302 = vunpack.c.l.s4 1966171168
    %v303 = vunpack.c.0.s8 %v302
    %v304 = vlaneseq
    %v305 = vshrl.u32 %v304, 7
    %v306 = vsub.s32 %v303, %v305
    %v307 = vrot.slane %v293, %v306
    %v308 = vcombine.high %v300, %v300
    %v309 = vcombine.high %v307, %v307
    %v311 = vunpack.c.l.s4 1966171168
    %v312 = vunpack.c.0.s8 %v311
    %v313 = vlaneseq
    %v314 = vshrl.u32 %v313, 7
    %v315 = vsub.s32 %v312, %v314
    %v316 = vrot.slane %v300, %v315
    %v318 = vunpack.c.l.s4 1966171168
    %v319 = vunpack.c.0.s8 %v318
    %v320 = vlaneseq
    %v321 = vshrl.u32 %v320, 7
    %v322 = vsub.s32 %v319, %v321
    %v323 = vrot.slane %v307, %v322
    %v325 = vunpack.c.l.s4 1966171168
    %v326 = vunpack.c.0.s8 %v325
    %v327 = vlaneseq
    %v328 = vshrl.u32 %v327, 7
    %v329 = vsub.s32 %v326, %v328
    %v330 = vrot.slane %v308, %v329
    %v332 = vunpack.c.l.s4 1966171168
    %v333 = vunpack.c.0.s8 %v332
    %v334 = vlaneseq
    %v335 = vshrl.u32 %v334, 7
    %v336 = vsub.s32 %v333, %v335
    %v337 = vrot.slane %v309, %v336
    %v338 = vcombine.high %v316, %v316
    %v339 = vcombine.high %v323, %v323
    %v340 = vcombine.high %v330, %v330
    %v341 = vcombine.high %v337, %v337
    %v342 = vlaneseq
    %v343 = vshrl.u32 %v342, 7
    %v344 = vsub.s32 0, %v343
    %v345 = vrot.slane %v316, %v344
    %v346 = vlaneseq
    %v347 = vshrl.u32 %v346, 7
    %v348 = vsub.s32 0, %v347
    %v349 = vrot.slane %v330, %v348
    %v350 = vlaneseq
    %v351 = vshrl.u32 %v350, 7
    %v352 = vsub.s32 0, %v351
    %v353 = vrot.slane %v338, %v352
    %v354 = vlaneseq
    %v355 = vshrl.u32 %v354, 7
    %v356 = vsub.s32 0, %v355
    %v357 = vrot.slane %v340, %v356
    %v358 = vlaneseq
    %v359 = vshrl.u32 %v358, 7
    %v360 = vsub.s32 0, %v359
    %v361 = vrot.slane %v323, %v360
    %v362 = vlaneseq
    %v363 = vshrl.u32 %v362, 7
    %v364 = vsub.s32 0, %v363
    %v365 = vrot.slane %v337, %v364
    %v366 = vlaneseq
    %v367 = vshrl.u32 %v366, 7
    %v368 = vsub.s32 0, %v367
    %v369 = vrot.slane %v339, %v368
    %v370 = vlaneseq
    %v371 = vshrl.u32 %v370, 7
    %v372 = vsub.s32 0, %v371
    %v373 = vrot.slane %v341, %v372
    %v382 = vadd.f32 %v169, %v345
    %v383 = vadd.f32 %v174, %v349
    %v384 = vadd.f32 %v179, %v353
    %v385 = vadd.f32 %v184, %v357
    %v386 = vadd.f32 %v189, %v361
    %v387 = vadd.f32 %v194, %v365
    %v388 = vadd.f32 %v199, %v369
    %v389 = vadd.f32 %v204, %v373
    %v390 = vtanh.pop %v382
    %v391 = vtanh.pop %v383
    %v392 = vtanh.pop %v384
    %v393 = vtanh.pop %v385
    %v394 = vtanh.pop %v386
    %v395 = vtanh.pop %v387
    %v396 = vtanh.pop %v388
    %v397 = vtanh.pop %v389
    %v398 = vld [vmem:[%s5] sm:$0x1]
    %v400 = vlaneseq
    %v401 = vshrl.u32 %v400, 7
    %v402 = vsub.s32 0, %v401
    %v403 = vrot.slane %v398, %v402
    %v405 = vmul.f32 %v390, %v403
    %v406 = vmul.f32 %v391, %v403
    %v407 = vmul.f32 %v392, %v403
    %v408 = vmul.f32 %v393, %v403
    %v409 = vmul.f32 %v394, %v403
    %v410 = vmul.f32 %v395, %v403
    %v411 = vmul.f32 %v396, %v403
    %v412 = vmul.f32 %v397, %v403
    %413 = vadd.xlane.f32.xlu0 %v405
    %v414 = vpop.xlane.xlu0 %413
    %415 = vadd.xlane.f32.xlu0 %v406
    %v416 = vpop.xlane.xlu0 %415
    %417 = vadd.xlane.f32.xlu0 %v407
    %v418 = vpop.xlane.xlu0 %417
    %419 = vadd.xlane.f32.xlu0 %v408
    %v420 = vpop.xlane.xlu0 %419
    %421 = vadd.xlane.f32.xlu0 %v409
    %v422 = vpop.xlane.xlu0 %421
    %423 = vadd.xlane.f32.xlu0 %v410
    %v424 = vpop.xlane.xlu0 %423
    %425 = vadd.xlane.f32.xlu0 %v411
    %v426 = vpop.xlane.xlu0 %425
    %427 = vadd.xlane.f32.xlu0 %v412
    %v428 = vpop.xlane.xlu0 %427
    %v437 = vlaneseq
    %v438 = vand.u32 %v437, 127
    %v439 = vlaneseq
    %v440 = vshrl.u32 %v439, 7
    %v441 = vsub.s32 %v438, %v440
    %v442 = vrot.slane %v414, %v441
    %v443 = vlaneseq
    %v444 = vshrl.u32 %v443, 7
    %v445 = vsub.s32 %v438, %v444
    %v446 = vrot.slane %v416, %v445
    %v447 = vlaneseq
    %v448 = vshrl.u32 %v447, 7
    %v449 = vsub.s32 %v438, %v448
    %v450 = vrot.slane %v418, %v449
    %v451 = vlaneseq
    %v452 = vshrl.u32 %v451, 7
    %v453 = vsub.s32 %v438, %v452
    %v454 = vrot.slane %v420, %v453
    %v455 = vlaneseq
    %v456 = vshrl.u32 %v455, 7
    %v457 = vsub.s32 %v438, %v456
    %v458 = vrot.slane %v422, %v457
    %v459 = vlaneseq
    %v460 = vshrl.u32 %v459, 7
    %v461 = vsub.s32 %v438, %v460
    %v462 = vrot.slane %v424, %v461
    %v463 = vlaneseq
    %v464 = vshrl.u32 %v463, 7
    %v465 = vsub.s32 %v438, %v464
    %v466 = vrot.slane %v426, %v465
    %v467 = vlaneseq
    %v468 = vshrl.u32 %v467, 7
    %v469 = vsub.s32 %v438, %v468
    %v470 = vrot.slane %v428, %v469
    %vm471 = vcmask 1041409
    %v472 = vsel %vm471, %v446, %v442
    %vm473 = vcmask 1042434
    %v474 = vsel %vm473, %v450, %v472
    %vm475 = vcmask 1043459
    %v476 = vsel %vm475, %v454, %v474
    %vm477 = vcmask 1044484
    %v478 = vsel %vm477, %v458, %v476
    %vm479 = vcmask 1045509
    %v480 = vsel %vm479, %v462, %v478
    %vm481 = vcmask 1046534
    %v482 = vsel %vm481, %v466, %v480
    %vm483 = vcmask 1047559
    %v484 = vsel %vm483, %v470, %v482
    %vm486 = vcmask 64512
    %v487 = vsel %vm486, %v484, -inf
    %488 = vmax.xlane.f32.xlu0 %v487
    %v489 = vpop.xlane.xlu0 %488
    %v491 = vlaneseq
    %v492 = vshrl.u32 %v491, 7
    %v493 = vsub.s32 0, %v492
    %v494 = vrot.slane %v489, %v493
    %v495 = vlaneseq
    %v496 = vshrl.u32 %v495, 7
    %v497 = vsub.s32 1, %v496
    %v498 = vrot.slane %v489, %v497
    %v499 = vlaneseq
    %v500 = vshrl.u32 %v499, 7
    %v501 = vsub.s32 2, %v500
    %v502 = vrot.slane %v489, %v501
    %v503 = vlaneseq
    %v504 = vshrl.u32 %v503, 7
    %v505 = vsub.s32 3, %v504
    %v506 = vrot.slane %v489, %v505
    %v507 = vlaneseq
    %v508 = vshrl.u32 %v507, 7
    %v509 = vsub.s32 4, %v508
    %v510 = vrot.slane %v489, %v509
    %v511 = vlaneseq
    %v512 = vshrl.u32 %v511, 7
    %v513 = vsub.s32 5, %v512
    %v514 = vrot.slane %v489, %v513
    %v515 = vlaneseq
    %v516 = vshrl.u32 %v515, 7
    %v517 = vsub.s32 6, %v516
    %v518 = vrot.slane %v489, %v517
    %v519 = vlaneseq
    %v520 = vshrl.u32 %v519, 7
    %v521 = vsub.s32 7, %v520
    %v522 = vrot.slane %v489, %v521
    %v531 = vsub.f32 %v414, %v494
    %v532 = vsub.f32 %v416, %v498
    %v533 = vsub.f32 %v418, %v502
    %v534 = vsub.f32 %v420, %v506
    %v535 = vsub.f32 %v422, %v510
    %v536 = vsub.f32 %v424, %v514
    %v537 = vsub.f32 %v426, %v518
    %v538 = vsub.f32 %v428, %v522
    %v539 = vmul.f32 %v531, 1.442695
    %v540 = vpow.pop %v539
    %v541 = vmul.f32 %v532, 1.442695
    %v542 = vpow.pop %v541
    %v543 = vmul.f32 %v533, 1.442695
    %v544 = vpow.pop %v543
    %v545 = vmul.f32 %v534, 1.442695
    %v546 = vpow.pop %v545
    %v547 = vmul.f32 %v535, 1.442695
    %v548 = vpow.pop %v547
    %v549 = vmul.f32 %v536, 1.442695
    %v550 = vpow.pop %v549
    %v551 = vmul.f32 %v537, 1.442695
    %v552 = vpow.pop %v551
    %v553 = vmul.f32 %v538, 1.442695
    %v554 = vpow.pop %v553
    %563 = vset.pattern.permute.xlu0 0
    %564 = vperm.xlu0 %563, %v540
    %v565 = vpop.permute.xlu0 %564
    %566 = vset.pattern.permute.xlu0 0
    %567 = vperm.xlu0 %566, %v542
    %v568 = vpop.permute.xlu0 %567
    %569 = vset.pattern.permute.xlu0 0
    %570 = vperm.xlu0 %569, %v544
    %v571 = vpop.permute.xlu0 %570
    %572 = vset.pattern.permute.xlu0 0
    %573 = vperm.xlu0 %572, %v546
    %v574 = vpop.permute.xlu0 %573
    %575 = vset.pattern.permute.xlu0 0
    %576 = vperm.xlu0 %575, %v548
    %v577 = vpop.permute.xlu0 %576
    %578 = vset.pattern.permute.xlu0 0
    %579 = vperm.xlu0 %578, %v550
    %v580 = vpop.permute.xlu0 %579
    %581 = vset.pattern.permute.xlu0 0
    %582 = vperm.xlu0 %581, %v552
    %v583 = vpop.permute.xlu0 %582
    %584 = vset.pattern.permute.xlu0 0
    %585 = vperm.xlu0 %584, %v554
    %v586 = vpop.permute.xlu0 %585
    %v587 = vlaneseq
    %v588 = vshrl.u32 %v587, 7
    %v589 = vsub.s32 %v438, %v588
    %v590 = vrot.slane %v565, %v589
    %v591 = vlaneseq
    %v592 = vshrl.u32 %v591, 7
    %v593 = vsub.s32 %v438, %v592
    %v594 = vrot.slane %v568, %v593
    %v595 = vlaneseq
    %v596 = vshrl.u32 %v595, 7
    %v597 = vsub.s32 %v438, %v596
    %v598 = vrot.slane %v571, %v597
    %v599 = vlaneseq
    %v600 = vshrl.u32 %v599, 7
    %v601 = vsub.s32 %v438, %v600
    %v602 = vrot.slane %v574, %v601
    %v603 = vlaneseq
    %v604 = vshrl.u32 %v603, 7
    %v605 = vsub.s32 %v438, %v604
    %v606 = vrot.slane %v577, %v605
    %v607 = vlaneseq
    %v608 = vshrl.u32 %v607, 7
    %v609 = vsub.s32 %v438, %v608
    %v610 = vrot.slane %v580, %v609
    %v611 = vlaneseq
    %v612 = vshrl.u32 %v611, 7
    %v613 = vsub.s32 %v438, %v612
    %v614 = vrot.slane %v583, %v613
    %v615 = vlaneseq
    %v616 = vshrl.u32 %v615, 7
    %v617 = vsub.s32 %v438, %v616
    %v618 = vrot.slane %v586, %v617
    %v619 = vsel %vm471, %v594, %v590
    %v620 = vsel %vm473, %v598, %v619
    %v621 = vsel %vm475, %v602, %v620
    %v622 = vsel %vm477, %v606, %v621
    %v623 = vsel %vm479, %v610, %v622
    %v624 = vsel %vm481, %v614, %v623
    %v625 = vsel %vm483, %v618, %v624
    %v627 = vsel %vm486, %v625, 0.0
    %628 = vadd.xlane.f32.xlu0 %v627
    %v629 = vpop.xlane.xlu0 %628
    %v630 = vrcp.pop %v629
    %v632 = vlaneseq
    %v633 = vshrl.u32 %v632, 7
    %v634 = vsub.s32 0, %v633
    %v635 = vrot.slane %v630, %v634
    %v636 = vlaneseq
    %v637 = vshrl.u32 %v636, 7
    %v638 = vsub.s32 1, %v637
    %v639 = vrot.slane %v630, %v638
    %v640 = vlaneseq
    %v641 = vshrl.u32 %v640, 7
    %v642 = vsub.s32 2, %v641
    %v643 = vrot.slane %v630, %v642
    %v644 = vlaneseq
    %v645 = vshrl.u32 %v644, 7
    %v646 = vsub.s32 3, %v645
    %v647 = vrot.slane %v630, %v646
    %v648 = vlaneseq
    %v649 = vshrl.u32 %v648, 7
    %v650 = vsub.s32 4, %v649
    %v651 = vrot.slane %v630, %v650
    %v652 = vlaneseq
    %v653 = vshrl.u32 %v652, 7
    %v654 = vsub.s32 5, %v653
    %v655 = vrot.slane %v630, %v654
    %v656 = vlaneseq
    %v657 = vshrl.u32 %v656, 7
    %v658 = vsub.s32 6, %v657
    %v659 = vrot.slane %v630, %v658
    %v660 = vlaneseq
    %v661 = vshrl.u32 %v660, 7
    %v662 = vsub.s32 7, %v661
    %v663 = vrot.slane %v630, %v662
    %v672 = vmul.f32 %v540, %v635
    %v673 = vmul.f32 %v542, %v639
    %v674 = vmul.f32 %v544, %v643
    %v675 = vmul.f32 %v546, %v647
    %v676 = vmul.f32 %v548, %v651
    %v677 = vmul.f32 %v550, %v655
    %v678 = vmul.f32 %v552, %v659
    %v679 = vmul.f32 %v554, %v663
    %681 = vset.pattern.permute.xlu0 0
    %682 = vperm.xlu0 %681, %v672
    %v683 = vpop.permute.xlu0 %682
    %686 = vset.pattern.permute.xlu0 0
    %687 = vperm.xlu0 %686, %v673
    %v688 = vpop.permute.xlu0 %687
    %691 = vset.pattern.permute.xlu0 0
    %692 = vperm.xlu0 %691, %v674
    %v693 = vpop.permute.xlu0 %692
    %696 = vset.pattern.permute.xlu0 0
    %697 = vperm.xlu0 %696, %v675
    %v698 = vpop.permute.xlu0 %697
    %701 = vset.pattern.permute.xlu0 0
    %702 = vperm.xlu0 %701, %v676
    %v703 = vpop.permute.xlu0 %702
    %706 = vset.pattern.permute.xlu0 0
    %707 = vperm.xlu0 %706, %v677
    %v708 = vpop.permute.xlu0 %707
    %711 = vset.pattern.permute.xlu0 0
    %712 = vperm.xlu0 %711, %v678
    %v713 = vpop.permute.xlu0 %712
    %716 = vset.pattern.permute.xlu0 0
    %717 = vperm.xlu0 %716, %v679
    %v718 = vpop.permute.xlu0 %717
    %v720 = vmul.f32 %v683, %v65
    %v721 = vmul.f32 %v688, %v66
    %v722 = vmul.f32 %v693, %v67
    %v723 = vmul.f32 %v698, %v68
    %v724 = vmul.f32 %v703, %v69
    %v725 = vmul.f32 %v708, %v70
    %v726 = vmul.f32 %v713, %v71
    %v727 = vmul.f32 %v718, %v72
    %v728 = vsel %vm77, %v720, 0.0
    %v729 = vrot.slane %v728, 4
    %v730 = vadd.f32 %v728, %v729
    %v731 = vrot.slane %v730, 2
    %v732 = vadd.f32 %v730, %v731
    %v733 = vrot.slane %v732, 1
    %v734 = vadd.f32 %v732, %v733
    %v735 = vsel %vm77, %v721, 0.0
    %v736 = vrot.slane %v735, 4
    %v737 = vadd.f32 %v735, %v736
    %v738 = vrot.slane %v737, 2
    %v739 = vadd.f32 %v737, %v738
    %v740 = vrot.slane %v739, 1
    %v741 = vadd.f32 %v739, %v740
    %v742 = vsel %vm77, %v722, 0.0
    %v743 = vrot.slane %v742, 4
    %v744 = vadd.f32 %v742, %v743
    %v745 = vrot.slane %v744, 2
    %v746 = vadd.f32 %v744, %v745
    %v747 = vrot.slane %v746, 1
    %v748 = vadd.f32 %v746, %v747
    %v749 = vsel %vm77, %v723, 0.0
    %v750 = vrot.slane %v749, 4
    %v751 = vadd.f32 %v749, %v750
    %v752 = vrot.slane %v751, 2
    %v753 = vadd.f32 %v751, %v752
    %v754 = vrot.slane %v753, 1
    %v755 = vadd.f32 %v753, %v754
    %v756 = vsel %vm77, %v724, 0.0
    %v757 = vrot.slane %v756, 4
    %v758 = vadd.f32 %v756, %v757
    %v759 = vrot.slane %v758, 2
    %v760 = vadd.f32 %v758, %v759
    %v761 = vrot.slane %v760, 1
    %v762 = vadd.f32 %v760, %v761
    %v763 = vsel %vm77, %v725, 0.0
    %v764 = vrot.slane %v763, 4
    %v765 = vadd.f32 %v763, %v764
    %v766 = vrot.slane %v765, 2
    %v767 = vadd.f32 %v765, %v766
    %v768 = vrot.slane %v767, 1
    %v769 = vadd.f32 %v767, %v768
    %v770 = vsel %vm77, %v726, 0.0
    %v771 = vrot.slane %v770, 4
    %v772 = vadd.f32 %v770, %v771
    %v773 = vrot.slane %v772, 2
    %v774 = vadd.f32 %v772, %v773
    %v775 = vrot.slane %v774, 1
    %v776 = vadd.f32 %v774, %v775
    %v777 = vsel %vm77, %v727, 0.0
    %v778 = vrot.slane %v777, 4
    %v779 = vadd.f32 %v777, %v778
    %v780 = vrot.slane %v779, 2
    %v781 = vadd.f32 %v779, %v780
    %v782 = vrot.slane %v781, 1
    %v783 = vadd.f32 %v781, %v782
    %v792 = vsel %vm471, %v741, %v734
    %v793 = vsel %vm473, %v748, %v792
    %v794 = vsel %vm475, %v755, %v793
    %v795 = vsel %vm477, %v762, %v794
    %v796 = vsel %vm479, %v769, %v795
    %v797 = vsel %vm481, %v776, %v796
    %v798 = vsel %vm483, %v783, %v797
    %800 = vst.msk [vmem:[#allocation8] sm:$0xff] %vm77, %v798
    // Predicated region
    $region38: #{tpu_custom_call.1} parent=1 // pred_check
      _
    $region39: #{tpu_custom_call.1} parent=1 // pred_check_branch
      %802 = sbr.rel (0) target = $region41
    $region40: #{tpu_custom_call.1} parent=1 // pred_region
      %s804 = ssub.s32 128, 32
      %805 = vsyncadd [#allocation4], %s804
      %s806 = sshll.u32 [#allocation8], 4
      %s807 = int_to_ptr.vmem [resolvable:$true] %s806
      %812 = dma.vmem_to_hbm [thread:$0]  %s807, 32, %s6, [#allocation4], 32, 32, 2
    $region41: #{tpu_custom_call.1} parent=1 // pred_fallthru
      _
    // Predicated region
    $region42: #{tpu_custom_call.1} parent=1 // pred_check
      _
    $region43: #{tpu_custom_call.1} parent=1 // pred_check_branch
      %814 = sbr.rel (0) target = $region45
    $region44: #{tpu_custom_call.1} parent=1 // pred_region
      %815 = dma.done [#allocation4], 128
    $region45: #{tpu_custom_call.1} parent=1 // pred_fallthru
      _
    %816 = vsyncpa [#allocation3], 1
    %817 = vsyncpa [#allocation6], 1
    %818 = vsyncpa [#allocation4], 1

</llo_original>
